<compile_context>
chip_gen: v7x
topology: tpu7x:2x2x1
jax: 0.10.0
libtpu: 0.0.40
codegen_flags: <defaults>
</compile_context>

<pallas_src>
import functools

import jax
import jax.numpy as jnp
from jax.experimental import pallas as pl
from jax.experimental.pallas import tpu as pltpu

LANE = 128


def _linear_kernel(x_ref, w_ref, b_ref, o_ref):
    # x_ref: (tm, F) VMEM tile, w_ref: (F, O_pad), b_ref: (1, O_pad), o_ref: (tm, O_pad)
    acc = jnp.dot(x_ref[...], w_ref[...], preferred_element_type=jnp.float32)
    o_ref[...] = (acc + b_ref[...]).astype(o_ref.dtype)


def prepare_params(weight, bias):
    """One-time (init-time) parameter prep: transpose to (F, O) and zero-pad O
    up to a lane multiple so the kernel's output block is lane-dense."""
    O, F_ = weight.shape
    O_pad = max(LANE, ((O + LANE - 1) // LANE) * LANE)
    w_t = jnp.zeros((F_, O_pad), weight.dtype).at[:, :O].set(weight.T)
    b_pad = jnp.zeros((1, O_pad), bias.dtype).at[0, :O].set(bias)
    return w_t, b_pad


@functools.partial(jax.jit, static_argnames=("out_channels", "tm"))
def classifier_forward(x, w_t, b_pad, *, out_channels, tm=256):
    """x: (B, ...) float32; w_t: (F, O_pad) pre-transposed/padded; b_pad: (1, O_pad)."""
    B = x.shape[0]
    x2d = x.reshape(B, -1)                        # (B, F) -- glue reshape in JAX
    F_ = x2d.shape[1]
    O_pad = w_t.shape[1]
    assert w_t.shape[0] == F_
    itemsize = x2d.dtype.itemsize
    cost = pl.CostEstimate(
        flops=2 * B * F_ * O_pad,
        transcendentals=0,
        bytes_accessed=(B * F_ + F_ * O_pad + O_pad + B * O_pad) * itemsize,
    )

    if B <= tm:
        # Tiny-batch path: no grid machinery at all, whole problem in VMEM.
        out_padded = pl.pallas_call(
            _linear_kernel,
            out_shape=jax.ShapeDtypeStruct((B, O_pad), x2d.dtype),
            in_specs=[
                pl.BlockSpec(memory_space=pltpu.MemorySpace.VMEM),
                pl.BlockSpec(memory_space=pltpu.MemorySpace.VMEM),
                pl.BlockSpec(memory_space=pltpu.MemorySpace.VMEM),
            ],
            out_specs=pl.BlockSpec(memory_space=pltpu.MemorySpace.VMEM),
            cost_estimate=cost,
        )(x2d, w_t, b_pad)
    else:
        # Large-batch path: tile only B; weight/bias stay resident across tiles.
        ntiles = pl.cdiv(B, tm)
        B_pad = ntiles * tm
        if B_pad != B:
            x2d = jnp.pad(x2d, ((0, B_pad - B), (0, 0)))
        out_padded = pl.pallas_call(
            _linear_kernel,
            out_shape=jax.ShapeDtypeStruct((B_pad, O_pad), x2d.dtype),
            grid=(ntiles,),
            in_specs=[
                pl.BlockSpec((tm, F_), lambda i: (i, 0)),
                pl.BlockSpec((F_, O_pad), lambda i: (0, 0)),
                pl.BlockSpec((1, O_pad), lambda i: (0, 0)),
            ],
            out_specs=pl.BlockSpec((tm, O_pad), lambda i: (i, 0)),
            compiler_params=pltpu.CompilerParams(
                dimension_semantics=("parallel",)),
            cost_estimate=cost,
        )(x2d, w_t, b_pad)
        out_padded = out_padded[:B]

    return out_padded[:, :out_channels]


if __name__ == "__main__":
    # Module hyperparameters (small, consistent with the forward pass):
    batch = 8
    num_nodes = 8
    node_feat = 16
    feature_channels = num_nodes * node_feat      # 128 (flattened input dim)
    out_channels = 32

    key = jax.random.PRNGKey(0)
    kx, kw, kb = jax.random.split(key, 3)

    # Deterministic parameter init (synthetic; shapes follow nn.Linear(F, O)).
    x = jax.random.normal(kx, (batch, num_nodes, node_feat), dtype=jnp.float32)
    weight = jax.random.normal(kw, (out_channels, feature_channels),
                               dtype=jnp.float32) * 0.05
    bias = jax.random.normal(kb, (out_channels,), dtype=jnp.float32) * 0.05

    # One-time parameter prep (transpose + lane-pad), not on the per-call path.
    w_t, b_pad = prepare_params(weight, bias)

    # --- Small-batch (no-grid) path ---
    out = classifier_forward(x, w_t, b_pad, out_channels=out_channels)
    out = jax.block_until_ready(out)
    ref = x.reshape(batch, -1) @ weight.T + bias
    assert out.shape == (batch, out_channels)
    assert jnp.allclose(out, ref, atol=1e-4, rtol=1e-4)

    # --- Large-batch (B-tiled, parallel grid) path ---
    big_batch = 272                                # forces grid path w/ partial tile
    xb = jax.random.normal(kx, (big_batch, num_nodes, node_feat), dtype=jnp.float32)
    out_b = classifier_forward(xb, w_t, b_pad, out_channels=out_channels, tm=128)
    out_b = jax.block_until_ready(out_b)
    ref_b = xb.reshape(big_batch, -1) @ weight.T + bias
    assert out_b.shape == (big_batch, out_channels)
    assert jnp.allclose(out_b, ref_b, atol=1e-4, rtol=1e-4)

    print("KERNEL_OK")
</pallas_src>

<mosaic_0001>
module attributes {stable_mosaic.version = 11 : i64} {
  func.func @_linear_kernel(%arg0: memref<8x128xf32, #tpu.memory_space<vmem>>, %arg1: memref<128x128xf32, #tpu.memory_space<vmem>>, %arg2: memref<1x128xf32, #tpu.memory_space<vmem>>, %arg3: memref<8x128xf32, #tpu.memory_space<vmem>>) attributes {dimension_semantics = [], scalar_prefetch = 0 : i64, scratch_operands = 0 : i64, tpu.core_type = #tpu.core_type<tc>} {
    %c0 = arith.constant 0 : index
    %c0_0 = arith.constant 0 : index
    %0 = vector.load %arg0[%c0, %c0_0] : memref<8x128xf32, #tpu.memory_space<vmem>>, vector<8x128xf32>
    %c0_1 = arith.constant 0 : index
    %c0_2 = arith.constant 0 : index
    %1 = vector.load %arg1[%c0_1, %c0_2] : memref<128x128xf32, #tpu.memory_space<vmem>>, vector<128x128xf32>
    %cst = arith.constant dense<0.000000e+00> : vector<8x128xf32>
    %2 = tpu.matmul %0, %1, %cst {dimension_numbers = #tpu.dot_dimension_numbers<[1], [0], [0], [1], [0, 0, 1, 1], [], []>} : vector<8x128xf32>, vector<128x128xf32>, vector<8x128xf32> -> vector<8x128xf32>
    %c0_3 = arith.constant 0 : index
    %c0_4 = arith.constant 0 : index
    %3 = vector.load %arg2[%c0_3, %c0_4] : memref<1x128xf32, #tpu.memory_space<vmem>>, vector<1x128xf32>
    %4 = vector.broadcast %3 : vector<1x128xf32> to vector<8x128xf32>
    %5 = arith.addf %2, %4 : vector<8x128xf32>
    %c0_5 = arith.constant 0 : index
    %c0_6 = arith.constant 0 : index
    %6 = vector.load %arg3[%c0_5, %c0_6] : memref<8x128xf32, #tpu.memory_space<vmem>>, vector<8x128xf32>
    tpu.vector_store %arg3[%c0_5, %c0_6], %5 {strides = array<i32>} : memref<8x128xf32, #tpu.memory_space<vmem>>, vector<8x128xf32>,
    return
  }
}

</mosaic_0001>

<llo_original>
// kernel: classifier_forward.1
$region0: #{classifier_forward.1}
  #allocation0 [shape = 'u32[]', space=smem, size = 0x4, offset = 0x4, fixed_abs, tag = 'smem constant byte address 0x4 - core index']
  #allocation1 [shape = 'u32[144,128]{1,0:T(1,128)}', space=vmem, size = 0x12000, scoped, tag = 'internal scratch']
  %s0 = inlined_call_operand.vmem [shape: f32[8,128], index: 0, kind: input, shape index: {}]
  %s1 = inlined_call_operand.hbm [shape: f32[128,128], index: 1, kind: input, shape index: {}]
  %s2 = inlined_call_operand.vmem [shape: f32[1,128], index: 2, kind: input, shape index: {}]
  %s3 = inlined_call_operand.hbm [shape: f32[8,128], index: 3, kind: output, shape index: {}]
  %s4 = sld [smem:[#allocation0]]
  $region26: #{classifier_forward.1} parent=0
    _
  %s6 = ssub.s32 1, %s4
  %s7 = scalar_select 0, %s6, %s4
  $region1: #{classifier_forward.1} parent=0
    #allocation2 [shape = 'u8[65536]{0}', space=vmem, size = 0x10000, scoped, tag = 'input window, operand 1, single buffered']
    #allocation3 [shape = 's32[1]{0}', space=sflag, size = 0x4, scoped, tag = 'scoped memory for classifier_forward.1']
    #allocation4 [shape = 's32[1]{0}', space=sflag, size = 0x4, scoped, tag = 'scoped memory for classifier_forward.1']
    #allocation5 [shape = 'u8[4096]{0}', space=vmem, size = 0x1000, scoped, tag = 'output window, operand 0, single buffered']
    %8 = vsyncpa [#allocation3], 0
    %9 = vsyncpa [#allocation4], 0
    // Predicated region
    $region2: #{classifier_forward.1} parent=1 // pred_check
      _
    $region3: #{classifier_forward.1} parent=1 // pred_check_branch
      %11 = sbr.rel (0) target = $region5
    $region4: #{classifier_forward.1} parent=1 // pred_region
      _
    $region5: #{classifier_forward.1} parent=1 // pred_fallthru
      _
    // Predicated region
    $region6: #{classifier_forward.1} parent=1 // pred_check
      _
    $region7: #{classifier_forward.1} parent=1 // pred_check_branch
      %13 = sbr.rel (0) target = $region9
    $region8: #{classifier_forward.1} parent=1 // pred_region
      %s15 = ssub.s32 2048, 2048
      %16 = vsyncadd [#allocation3], %s15
      %s17 = sshll.u32 [#allocation2], 4
      %s18 = int_to_ptr.vmem [resolvable:$true] %s17
      %23 = dma.hbm_to_vmem [thread:$0]  %s1, 2048, %s18, [#allocation3], 128, 128, 8
    $region9: #{classifier_forward.1} parent=1 // pred_fallthru
      _
    // Predicated region
    $region10: #{classifier_forward.1} parent=1 // pred_check
      _
    $region11: #{classifier_forward.1} parent=1 // pred_check_branch
      %25 = sbr.rel (0) target = $region13
    $region12: #{classifier_forward.1} parent=1 // pred_region
      _
    $region13: #{classifier_forward.1} parent=1 // pred_fallthru
      _
    // Predicated region
    $region14: #{classifier_forward.1} parent=1 // pred_check
      _
    $region15: #{classifier_forward.1} parent=1 // pred_check_branch
      %27 = sbr.rel (0) target = $region17
    $region16: #{classifier_forward.1} parent=1 // pred_region
      %28 = dma.done [#allocation3], 2048
    $region17: #{classifier_forward.1} parent=1 // pred_fallthru
      _
    %v29 = vld [vmem:[%s0] sm:$0xff]
    %v30 = vld [vmem:[#allocation2] sm:$0xff]
    %v31 = vld [vmem:[#allocation2 + $0x8] sm:$0xff]
    %v32 = vld [vmem:[#allocation2 + $0x10] sm:$0xff]
    %v33 = vld [vmem:[#allocation2 + $0x18] sm:$0xff]
    %v34 = vld [vmem:[#allocation2 + $0x20] sm:$0xff]
    %v35 = vld [vmem:[#allocation2 + $0x28] sm:$0xff]
    %v36 = vld [vmem:[#allocation2 + $0x30] sm:$0xff]
    %v37 = vld [vmem:[#allocation2 + $0x38] sm:$0xff]
    %v38 = vld [vmem:[#allocation2 + $0x40] sm:$0xff]
    %v39 = vld [vmem:[#allocation2 + $0x48] sm:$0xff]
    %v40 = vld [vmem:[#allocation2 + $0x50] sm:$0xff]
    %v41 = vld [vmem:[#allocation2 + $0x58] sm:$0xff]
    %v42 = vld [vmem:[#allocation2 + $0x60] sm:$0xff]
    %v43 = vld [vmem:[#allocation2 + $0x68] sm:$0xff]
    %v44 = vld [vmem:[#allocation2 + $0x70] sm:$0xff]
    %v45 = vld [vmem:[#allocation2 + $0x78] sm:$0xff]
    %v46 = vld [vmem:[%s2] sm:$0x1]
    %v48 = vlaneseq
    %v49 = vshrl.u32 %v48, 7
    %v50 = vsub.s32 0, %v49
    %v51 = vrot.slane %v46, %v50
    %53 = vmatprep.subr.mxu0 0.0
    %54 = vmatpush1.msra.mxu0 %v30
    %55 = vmatprep.subr.mxu0 0.0
    %56 = vmatpush1.msra.mxu0 %v31
    %57 = vmatprep.subr.mxu0 0.0
    %58 = vmatpush1.msra.mxu0 %v32
    %59 = vmatprep.subr.mxu0 0.0
    %60 = vmatpush1.msra.mxu0 %v33
    %61 = vmatprep.subr.mxu0 0.0
    %62 = vmatpush1.msra.mxu0 %v34
    %63 = vmatprep.subr.mxu0 0.0
    %64 = vmatpush1.msra.mxu0 %v35
    %65 = vmatprep.subr.mxu0 0.0
    %66 = vmatpush1.msra.mxu0 %v36
    %67 = vmatprep.subr.mxu0 0.0
    %68 = vmatpush1.msra.mxu0 %v37
    %69 = vmatprep.subr.mxu0 0.0
    %70 = vmatpush1.msra.mxu0 %v38
    %71 = vmatprep.subr.mxu0 0.0
    %72 = vmatpush1.msra.mxu0 %v39
    %73 = vmatprep.subr.mxu0 0.0
    %74 = vmatpush1.msra.mxu0 %v40
    %75 = vmatprep.subr.mxu0 0.0
    %76 = vmatpush1.msra.mxu0 %v41
    %77 = vmatprep.subr.mxu0 0.0
    %78 = vmatpush1.msra.mxu0 %v42
    %79 = vmatprep.subr.mxu0 0.0
    %80 = vmatpush1.msra.mxu0 %v43
    %81 = vmatprep.subr.mxu0 0.0
    %82 = vmatpush1.msra.mxu0 %v44
    %83 = vmatprep.subr.mxu0 0.0
    %84 = vmatpush1.msra.mxu0 %v45
    %85 = vmatprep.subr.mxu0 0.0
    %86 = vmatpush1.msra.mxu0 0.0
    %87 = vmatprep.subr.mxu0 0.0
    %88 = vmatpush1.msra.mxu0 0.0
    %89 = vmatprep.subr.mxu0 0.0
    %90 = vmatpush1.msra.mxu0 0.0
    %91 = vmatprep.subr.mxu0 0.0
    %92 = vmatpush1.msra.mxu0 0.0
    %93 = vmatprep.subr.mxu0 0.0
    %94 = vmatpush1.msra.mxu0 0.0
    %95 = vmatprep.subr.mxu0 0.0
    %96 = vmatpush1.msra.mxu0 0.0
    %97 = vmatprep.subr.mxu0 0.0
    %98 = vmatpush1.msra.mxu0 0.0
    %99 = vmatprep.subr.mxu0 0.0
    %100 = vmatpush1.msra.mxu0 0.0
    %101 = vmatprep.subr.mxu0 0.0
    %102 = vmatpush1.msra.mxu0 0.0
    %103 = vmatprep.subr.mxu0 0.0
    %104 = vmatpush1.msra.mxu0 0.0
    %105 = vmatprep.subr.mxu0 0.0
    %106 = vmatpush1.msra.mxu0 0.0
    %107 = vmatprep.subr.mxu0 0.0
    %108 = vmatpush1.msra.mxu0 0.0
    %109 = vmatprep.subr.mxu0 0.0
    %110 = vmatpush1.msra.mxu0 0.0
    %111 = vmatprep.subr.mxu0 0.0
    %112 = vmatpush1.msra.mxu0 0.0
    %113 = vmatprep.subr.mxu0 0.0
    %114 = vmatpush1.msra.mxu0 0.0
    %115 = vmatprep.subr.mxu0 0.0
    %116 = vmatpush1.msra.mxu0 0.0
    %117 = vmatprep.mubr.f32.mxu0 0.0
    %118 = vmatmul.mubr.f32.gmra.mrb[0].mxu0 %v29
    %v119 = vpop.f32.mrb[0].mxu0
    %v120 = vadd.f32 %v51, %v119
    %v121 = vpop.f32.mrb[0].mxu0
    %122 = vdwg.mxu0
    %123 = vst [vmem:[#allocation5] sm:$0xff] %v120
    // Predicated region
    $region18: #{classifier_forward.1} parent=1 // pred_check
      _
    $region19: #{classifier_forward.1} parent=1 // pred_check_branch
      %125 = sbr.rel (0) target = $region21
    $region20: #{classifier_forward.1} parent=1 // pred_region
      %s127 = ssub.s32 128, 128
      %128 = vsyncadd [#allocation4], %s127
      %s130 = sshll.u32 [#allocation5], 4
      %s131 = int_to_ptr.vmem [resolvable:$true] %s130
      %133 = dma.vmem_to_hbm [thread:$0]  %s131, 128, %s3, [#allocation4]
    $region21: #{classifier_forward.1} parent=1 // pred_fallthru
      _
    // Predicated region
    $region22: #{classifier_forward.1} parent=1 // pred_check
      _
    $region23: #{classifier_forward.1} parent=1 // pred_check_branch
      %135 = sbr.rel (0) target = $region25
    $region24: #{classifier_forward.1} parent=1 // pred_region
      %136 = dma.done [#allocation4], 128
    $region25: #{classifier_forward.1} parent=1 // pred_fallthru
      _
    %137 = vsyncpa [#allocation3], 1
    %138 = vsyncpa [#allocation4], 1

</llo_original>
